<compile_context>
chip_gen: v7x
topology: tpu7x:2x2x1
jax: 0.10.0
libtpu: 0.0.40
codegen_flags: <defaults>
</compile_context>

<pallas_src>
import functools

import jax
import jax.numpy as jnp
from jax.experimental import pallas as pl
from jax.experimental.pallas import tpu as pltpu


# ---------------------------------------------------------------------------
# Kernels
# ---------------------------------------------------------------------------

def _pool_kernel(x0_ref, x2_ref, x4_ref, o_ref):
    """Partial spatial sums for one (batch, hw-tile) block.

    x*_ref: (1, C, T)   o_ref: (1, 1, 3, C)  (float32 partial sums)
    """
    o_ref[0, 0, 0, :] = jnp.sum(x0_ref[0].astype(jnp.float32), axis=-1)
    o_ref[0, 0, 1, :] = jnp.sum(x2_ref[0].astype(jnp.float32), axis=-1)
    o_ref[0, 0, 2, :] = jnp.sum(x4_ref[0].astype(jnp.float32), axis=-1)


def _mlp_kernel(s_ref, w1t_ref, b1_ref, w2t_ref, b2_ref, w3t_ref, b3_ref, o_ref):
    """Batched squeeze-excitation MLP in row form.

    s_ref: (N, 3C) pooled means; weights pre-transposed so every matmul is
    (N, k) @ (k, m) with channels on lanes. Output: sigmoid weights (N, 3C).
    """
    s = s_ref[...]
    h = jnp.dot(s, w1t_ref[...], preferred_element_type=jnp.float32) + b1_ref[...]
    h = jnp.maximum(h, 0.0)
    h = jnp.dot(h, w2t_ref[...], preferred_element_type=jnp.float32) + b2_ref[...]
    h = jnp.maximum(h, 0.0)
    e = jnp.dot(h, w3t_ref[...], preferred_element_type=jnp.float32) + b3_ref[...]
    o_ref[...] = jax.nn.sigmoid(e)


def _scale_kernel(w_ref, x0_ref, x2_ref, x4_ref, o_ref):
    """Weighted sum of the three branches for one (batch, hw-tile) block.

    w_ref: (1, 3, C, 1) per-batch weights (broadcast over lanes).
    x*_ref / o_ref: (1, C, T) lane-dense tiles.
    """
    w = w_ref[0]                               # (3, C, 1) float32
    acc = (x0_ref[0].astype(jnp.float32) * w[0]
           + x2_ref[0].astype(jnp.float32) * w[1]
           + x4_ref[0].astype(jnp.float32) * w[2])
    o_ref[0] = acc.astype(o_ref.dtype)


# ---------------------------------------------------------------------------
# Wrapper
# ---------------------------------------------------------------------------

_LANE = 128


def _round_up(x, m):
    return ((x + m - 1) // m) * m


def _choose_hw_tile(C, HW, itemsize):
    """Lane-dense HW tile: multiple of 128, <=1024 lanes, per-block bytes capped
    (~2 MiB) so 3 inputs + 1 output, double-buffered, fit every generation."""
    hw_lane = _round_up(HW, _LANE)
    cap = (2 * 1024 * 1024) // max(1, C * itemsize)
    cap = max(_LANE, (cap // _LANE) * _LANE)
    return min(hw_lane, 1024, cap)


def csaf_forward(x0, x2, x4, params):
    """x0, x2, x4: (N, C, H, W).  params = (W1, b1, W2, b2, W3, b3) with
    W1:(hid,3C) b1:(hid,1) W2:(hid,hid) b2:(hid,1) W3:(3C,hid) b3:(3C,1)."""
    W1, b1, W2, b2, W3, b3 = params
    N, C, H, W = x0.shape
    HW = H * W
    dtype = x0.dtype
    itemsize = jnp.dtype(dtype).itemsize
    hid = W1.shape[0]

    T = _choose_hw_tile(C, HW, itemsize)
    HW_pad = _round_up(HW, T)
    nT = HW_pad // T

    def prep(x):
        xr = x.reshape(N, C, HW)
        if HW_pad != HW:
            # zero-pad: padded lanes contribute nothing to the pooling sum and
            # produce zeros in the scale pass (sliced off below).
            xr = jnp.pad(xr, ((0, 0), (0, 0), (0, HW_pad - HW)))
        return xr

    x0r, x2r, x4r = prep(x0), prep(x2), prep(x4)

    block_bytes = C * T * itemsize
    vmem_limit = int(min(48 * 1024 * 1024,
                         max(32 * 1024 * 1024, 10 * block_bytes + (4 << 20))))

    x_spec = pl.BlockSpec((1, C, T), lambda n, t: (n, 0, t))

    # ---- Pass 1: pooled partial sums per (batch, hw-tile). -----------------
    psum = pl.pallas_call(
        _pool_kernel,
        out_shape=jax.ShapeDtypeStruct((N, nT, 3, C), jnp.float32),
        grid=(N, nT),
        in_specs=[x_spec, x_spec, x_spec],
        out_specs=pl.BlockSpec((1, 1, 3, C), lambda n, t: (n, t, 0, 0)),
        compiler_params=pltpu.CompilerParams(
            dimension_semantics=("parallel", "parallel"),
            vmem_limit_bytes=vmem_limit),
    )(x0r, x2r, x4r)

    # Tiny cross-tile reduction + scaling to means (O(N*3C) glue in XLA).
    s = (jnp.sum(psum, axis=1) * jnp.float32(1.0 / HW)).reshape(N, 3 * C)

    # ---- Pass 2: batched row-form squeeze-excitation MLP. ------------------
    W1T = W1.T.astype(jnp.float32)          # (3C, hid)
    W2T = W2.T.astype(jnp.float32)          # (hid, hid)
    W3T = W3.T.astype(jnp.float32)          # (hid, 3C)
    b1r = b1.reshape(1, hid).astype(jnp.float32)
    b2r = b2.reshape(1, hid).astype(jnp.float32)
    b3r = b3.reshape(1, 3 * C).astype(jnp.float32)

    def full_spec(a):
        nd = a.ndim
        return pl.BlockSpec(a.shape, lambda i, _nd=nd: (0,) * _nd)

    e = pl.pallas_call(
        _mlp_kernel,
        out_shape=jax.ShapeDtypeStruct((N, 3 * C), jnp.float32),
        grid=(1,),
        in_specs=[full_spec(s), full_spec(W1T), full_spec(b1r),
                  full_spec(W2T), full_spec(b2r),
                  full_spec(W3T), full_spec(b3r)],
        out_specs=pl.BlockSpec((N, 3 * C), lambda i: (0, 0)),
        compiler_params=pltpu.CompilerParams(
            dimension_semantics=("arbitrary",)),
    )(s, W1T, b1r, W2T, b2r, W3T, b3r)

    # Per-batch weights in lane-broadcastable column form (tiny layout glue).
    w_col = e.reshape(N, 3, C)[..., None]    # (N, 3, C, 1)

    # ---- Pass 3: lane-dense weighted sum, tiled over (batch, hw-tile). -----
    out = pl.pallas_call(
        _scale_kernel,
        out_shape=jax.ShapeDtypeStruct((N, C, HW_pad), dtype),
        grid=(N, nT),
        in_specs=[pl.BlockSpec((1, 3, C, 1), lambda n, t: (n, 0, 0, 0)),
                  x_spec, x_spec, x_spec],
        out_specs=x_spec,
        compiler_params=pltpu.CompilerParams(
            dimension_semantics=("parallel", "parallel"),
            vmem_limit_bytes=vmem_limit),
    )(w_col, x0r, x2r, x4r)

    if HW_pad != HW:
        out = out[:, :, :HW]
    return out.reshape(N, C, H, W)


# ---------------------------------------------------------------------------
# Pure-JAX reference (mirrors the PyTorch forward)
# ---------------------------------------------------------------------------

def csaf_reference(x0, x2, x4, params):
    W1, b1, W2, b2, W3, b3 = params
    C = x0.shape[1]

    def pool(x):
        return jnp.mean(x, axis=(2, 3))          # (N, C)

    s = jnp.concatenate([pool(x0), pool(x2), pool(x4)], axis=1)   # (N, 3C)
    h = jnp.maximum(s @ W1.T + b1[:, 0], 0.0)
    h = jnp.maximum(h @ W2.T + b2[:, 0], 0.0)
    e = jax.nn.sigmoid(h @ W3.T + b3[:, 0])                       # (N, 3C)
    w0, w2, w4 = e[:, :C], e[:, C:2 * C], e[:, 2 * C:]

    def bc(w):
        return w[:, :, None, None]

    return x0 * bc(w0) + x2 * bc(w2) + x4 * bc(w4)


def make_params(key, in_chnls, ratio=4):
    """Deterministic synthetic weights matching nn.Conv2d(...,1,1,0) shapes."""
    hid = in_chnls // ratio
    ks = jax.random.split(key, 6)
    scale = 0.1
    W1 = scale * jax.random.normal(ks[0], (hid, in_chnls), jnp.float32)   # compress1
    b1 = scale * jax.random.normal(ks[1], (hid, 1), jnp.float32)
    W2 = scale * jax.random.normal(ks[2], (hid, hid), jnp.float32)        # compress2
    b2 = scale * jax.random.normal(ks[3], (hid, 1), jnp.float32)
    W3 = scale * jax.random.normal(ks[4], (in_chnls, hid), jnp.float32)   # excitation
    b3 = scale * jax.random.normal(ks[5], (in_chnls, 1), jnp.float32)
    return W1, b1, W2, b2, W3, b3


if __name__ == "__main__":
    # Small shapes: each branch has C=8 channels -> in_chnls for CSAF = 3*C = 24.
    N, C, H, W = 2, 8, 16, 16
    in_chnls = 3 * C

    key = jax.random.PRNGKey(0)
    k0, k2, k4, kp = jax.random.split(key, 4)
    x0 = jax.random.normal(k0, (N, C, H, W), jnp.float32)
    x2 = jax.random.normal(k2, (N, C, H, W), jnp.float32)
    x4 = jax.random.normal(k4, (N, C, H, W), jnp.float32)

    params = make_params(kp, in_chnls, ratio=4)

    y = csaf_forward(x0, x2, x4, params)
    y = jax.block_until_ready(y)

    y_ref = csaf_reference(x0, x2, x4, params)
    assert y.shape == (N, C, H, W)
    assert jnp.allclose(y, y_ref, rtol=1e-5, atol=1e-5), "Pallas output mismatch vs reference"

    print("KERNEL_OK")
</pallas_src>

<mosaic_0001>
module attributes {stable_mosaic.version = 11 : i64} {
  func.func @_pool_kernel(%arg0: i32, %arg1: i32, %arg2: memref<1x8x256xf32, #tpu.memory_space<vmem>>, %arg3: memref<1x8x256xf32, #tpu.memory_space<vmem>>, %arg4: memref<1x8x256xf32, #tpu.memory_space<vmem>>, %arg5: memref<1x1x3x8xf32, #tpu.memory_space<vmem>>) attributes {dimension_semantics = [#tpu.dimension_semantics<parallel>, #tpu.dimension_semantics<parallel>], iteration_bounds = array<i64: 2, 1>, scalar_prefetch = 0 : i64, scratch_operands = 0 : i64, tpu.core_type = #tpu.core_type<tc>, window_params = [{transform_indices = @transform_0, window_bounds = array<i64: 1, 8, 256>}, {transform_indices = @transform_1, window_bounds = array<i64: 1, 8, 256>}, {transform_indices = @transform_2, window_bounds = array<i64: 1, 8, 256>}, {transform_indices = @transform_3, window_bounds = array<i64: 1, 1, 3, 8>}]} {
    %c0 = arith.constant 0 : index
    %c0_0 = arith.constant 0 : index
    %c0_1 = arith.constant 0 : index
    %0 = vector.load %arg2[%c0, %c0_0, %c0_1] : memref<1x8x256xf32, #tpu.memory_space<vmem>>, vector<1x8x256xf32>
    %1 = vector.shape_cast %0 : vector<1x8x256xf32> to vector<8x256xf32>
    %cst = arith.constant dense<0.000000e+00> : vector<8xf32>
    %2 = vector.multi_reduction <add>, %1, %cst [1] : vector<8x256xf32> to vector<8xf32>
    %c0_2 = arith.constant 0 : index
    %c0_3 = arith.constant 0 : index
    %c0_4 = arith.constant 0 : index
    %c0_5 = arith.constant 0 : index
    %3 = vector.load %arg5[%c0_2, %c0_3, %c0_4, %c0_5] : memref<1x1x3x8xf32, #tpu.memory_space<vmem>>, vector<1x1x1x8xf32>
    %4 = vector.shape_cast %3 : vector<1x1x1x8xf32> to vector<8xf32>
    %5 = vector.shape_cast %2 : vector<8xf32> to vector<1x1x1x8xf32>
    tpu.vector_store %arg5[%c0_2, %c0_3, %c0_4, %c0_5], %5 {strides = array<i32>} : memref<1x1x3x8xf32, #tpu.memory_space<vmem>>, vector<1x1x1x8xf32>,
    %c0_6 = arith.constant 0 : index
    %c0_7 = arith.constant 0 : index
    %c0_8 = arith.constant 0 : index
    %6 = vector.load %arg3[%c0_6, %c0_7, %c0_8] : memref<1x8x256xf32, #tpu.memory_space<vmem>>, vector<1x8x256xf32>
    %7 = vector.shape_cast %6 : vector<1x8x256xf32> to vector<8x256xf32>
    %cst_9 = arith.constant dense<0.000000e+00> : vector<8xf32>
    %8 = vector.multi_reduction <add>, %7, %cst_9 [1] : vector<8x256xf32> to vector<8xf32>
    %c0_10 = arith.constant 0 : index
    %c0_11 = arith.constant 0 : index
    %c1 = arith.constant 1 : index
    %c0_12 = arith.constant 0 : index
    %9 = vector.load %arg5[%c0_10, %c0_11, %c1, %c0_12] : memref<1x1x3x8xf32, #tpu.memory_space<vmem>>, vector<1x1x1x8xf32>
    %10 = vector.shape_cast %9 : vector<1x1x1x8xf32> to vector<8xf32>
    %11 = vector.shape_cast %8 : vector<8xf32> to vector<1x1x1x8xf32>
    tpu.vector_store %arg5[%c0_10, %c0_11, %c1, %c0_12], %11 {strides = array<i32>} : memref<1x1x3x8xf32, #tpu.memory_space<vmem>>, vector<1x1x1x8xf32>,
    %c0_13 = arith.constant 0 : index
    %c0_14 = arith.constant 0 : index
    %c0_15 = arith.constant 0 : index
    %12 = vector.load %arg4[%c0_13, %c0_14, %c0_15] : memref<1x8x256xf32, #tpu.memory_space<vmem>>, vector<1x8x256xf32>
    %13 = vector.shape_cast %12 : vector<1x8x256xf32> to vector<8x256xf32>
    %cst_16 = arith.constant dense<0.000000e+00> : vector<8xf32>
    %14 = vector.multi_reduction <add>, %13, %cst_16 [1] : vector<8x256xf32> to vector<8xf32>
    %c0_17 = arith.constant 0 : index
    %c0_18 = arith.constant 0 : index
    %c2 = arith.constant 2 : index
    %c0_19 = arith.constant 0 : index
    %15 = vector.load %arg5[%c0_17, %c0_18, %c2, %c0_19] : memref<1x1x3x8xf32, #tpu.memory_space<vmem>>, vector<1x1x1x8xf32>
    %16 = vector.shape_cast %15 : vector<1x1x1x8xf32> to vector<8xf32>
    %17 = vector.shape_cast %14 : vector<8xf32> to vector<1x1x1x8xf32>
    tpu.vector_store %arg5[%c0_17, %c0_18, %c2, %c0_19], %17 {strides = array<i32>} : memref<1x1x3x8xf32, #tpu.memory_space<vmem>>, vector<1x1x1x8xf32>,
    return
  }
  func.func @transform_0(%arg0: i32, %arg1: i32) -> (i32, i32, i32) {
    %c0_i32 = arith.constant 0 : i32
    %c0_i32_0 = arith.constant 0 : i32
    return %arg0, %c0_i32, %arg1 : i32, i32, i32
  }
  func.func @transform_1(%arg0: i32, %arg1: i32) -> (i32, i32, i32) {
    %c0_i32 = arith.constant 0 : i32
    %c0_i32_0 = arith.constant 0 : i32
    return %arg0, %c0_i32, %arg1 : i32, i32, i32
  }
  func.func @transform_2(%arg0: i32, %arg1: i32) -> (i32, i32, i32) {
    %c0_i32 = arith.constant 0 : i32
    %c0_i32_0 = arith.constant 0 : i32
    return %arg0, %c0_i32, %arg1 : i32, i32, i32
  }
  func.func @transform_3(%arg0: i32, %arg1: i32) -> (i32, i32, i32, i32) {
    %c0_i32 = arith.constant 0 : i32
    %c0_i32_0 = arith.constant 0 : i32
    %c0_i32_1 = arith.constant 0 : i32
    return %arg0, %arg1, %c0_i32, %c0_i32_0 : i32, i32, i32, i32
  }
}

</mosaic_0001>

<llo_original>
// kernel: tpu_custom_call.1
$region0: #{tpu_custom_call.1}
  #allocation0 [shape = 'u32[]', space=smem, size = 0x4, offset = 0x4, fixed_abs, tag = 'smem constant byte address 0x4 - core index']
  #allocation1 [shape = 'u32[144,128]{1,0:T(1,128)}', space=vmem, size = 0x12000, scoped, tag = 'internal scratch']
  %s0 = inlined_call_operand.hbm [shape: f32[2,8,256], index: 0, kind: input, shape index: {}]
  %s1 = inlined_call_operand.hbm [shape: f32[2,8,256], index: 1, kind: input, shape index: {}]
  %s2 = inlined_call_operand.hbm [shape: f32[2,8,256], index: 2, kind: input, shape index: {}]
  %s3 = inlined_call_operand.vmem [shape: f32[2,1,3,8], index: 3, kind: output, shape index: {}]
  %s4 = sld [smem:[#allocation0]]
  $region57: #{tpu_custom_call.1} parent=0
    _
  %s6 = ssub.s32 1, %s4
  %s7 = scalar_select 0, %s6, %s4
  $region1: #{tpu_custom_call.1} parent=0
    #allocation2 [shape = 'u8[16384]{0}', space=vmem, size = 0x4000, scoped, tag = 'input window, operand 0']
    #allocation3 [shape = 's32[2]{0}', space=sflag, size = 0x8, scoped, tag = 'scoped memory for tpu_custom_call.1']
    #allocation4 [shape = 'u8[16384]{0}', space=vmem, size = 0x4000, scoped, tag = 'input window, operand 1']
    #allocation5 [shape = 's32[2]{0}', space=sflag, size = 0x8, scoped, tag = 'scoped memory for tpu_custom_call.1']
    #allocation6 [shape = 'u8[16384]{0}', space=vmem, size = 0x4000, scoped, tag = 'input window, operand 2']
    %8 = vsyncpa [#allocation3], 0
    %s9 = scalar_lea.sflag [#allocation3], 1
    %10 = vsyncpa %s9, 0
    %11 = vsyncpa [#allocation5], 0
    %s12 = scalar_lea.sflag [#allocation5], 1
    %13 = vsyncpa %s12, 0
    loop: start=0, step=1, limit=4
    $region2: #{tpu_custom_call.1} parent=1 // loop_pre_header
      _
    $region3: #{tpu_custom_call.1} parent=1 // loop_header
      %s15 = sphi 0, %s19
      %p16 = scmp.ge.s32.totalorder %s15, 4
      %s22 = sphi 0, %s34
      %s23 = sphi 0, %s30
      %s24 = sphi 0, %s22
      %s25 = sphi 0, %s23
      %s26 = sphi 0, %s24
      %s27 = sphi 0, %s25
      %s39 = sphi 0, %s41
      %s42 = sphi 0, %s39
      %s43 = sphi 0, %s42
      %s59 = sphi 0, %s43
      %s67 = sphi 0, %s69
      %s70 = sphi 0, %s67
      %s71 = sphi 0, %s70
      %s87 = sphi 0, %s71
      %s95 = sphi 0, %s97
      %s98 = sphi 0, %s95
      %s99 = sphi 0, %s98
      %s115 = sphi 0, %s99
      %s123 = sphi 0, %s125
      %s126 = sphi 0, %s123
      %s127 = sphi 0, %s126
      %s143 = sphi 0, %s127
    $region4: #{tpu_custom_call.1} parent=1 // loop_header_branch
      %18 = sbr.rel (%p16) target = $region8
    $region5: #{tpu_custom_call.1} parent=1 // loop_body
      %s20 = ssub.s32 %s15, 1
      %s21 = ssub.s32 %s15, 2
      %s28 = sadd.s32 1, %s23
      %p29 = scmp.ge.s32.totalorder %s28, 1
      %s30 = scalar_select %p29, 0, %s28
      %s31 = sadd.s32 1, %s22
      %s32 = scalar_select %p29, %s31, %s22
      %p33 = scmp.ge.s32.totalorder %s32, 2
      %s34 = scalar_select %p33, 0, %s32
      %s35 = ssub.s32 %s22, %s34
      %s36 = ssub.s32 %s23, %s30
      %s37 = sor.u32 %s35, %s36
      %p38 = scmp.eq.s32.totalorder %s37, 0
      %s40 = sadd.s32 %s39, 1
      %s41 = scalar_select %p38, %s39, %s40
      %p44 = pneg %p38
      %p45 = scmp.eq.s32.totalorder %s15, 1
      %p46 = por %p44, %p45
      %p47 = scmp.ne.s32.totalorder %s39, %s42
      %p48 = scmp.eq.s32.totalorder %s15, 0
      %p49 = por %p47, %p48
      %p50 = scmp.ne.s32.totalorder %s39, %s42
      %p51 = scmp.eq.s32.totalorder %s20, 1
      %p52 = por %p50, %p51
      %p53 = scmp.ne.s32.totalorder %s42, %s43
      %p54 = scmp.eq.s32.totalorder %s20, 0
      %p55 = por %p53, %p54
      %p56 = scmp.ne.s32.totalorder %s42, %s43
      %p57 = scmp.eq.s32.totalorder %s21, 1
      %p58 = por %p56, %p57
      %p60 = scmp.ne.s32.totalorder %s43, %s59
      %p61 = scmp.eq.s32.totalorder %s21, 0
      %p62 = por %p60, %p61
      %s63 = ssub.s32 %s22, %s34
      %s64 = ssub.s32 %s23, %s30
      %s65 = sor.u32 %s63, %s64
      %p66 = scmp.eq.s32.totalorder %s65, 0
      %s68 = sadd.s32 %s67, 1
      %s69 = scalar_select %p66, %s67, %s68
      %p72 = pneg %p66
      %p73 = scmp.eq.s32.totalorder %s15, 1
      %p74 = por %p72, %p73
      %p75 = scmp.ne.s32.totalorder %s67, %s70
      %p76 = scmp.eq.s32.totalorder %s15, 0
      %p77 = por %p75, %p76
      %p78 = scmp.ne.s32.totalorder %s67, %s70
      %p79 = scmp.eq.s32.totalorder %s20, 1
      %p80 = por %p78, %p79
      %p81 = scmp.ne.s32.totalorder %s70, %s71
      %p82 = scmp.eq.s32.totalorder %s20, 0
      %p83 = por %p81, %p82
      %p84 = scmp.ne.s32.totalorder %s70, %s71
      %p85 = scmp.eq.s32.totalorder %s21, 1
      %p86 = por %p84, %p85
      %p88 = scmp.ne.s32.totalorder %s71, %s87
      %p89 = scmp.eq.s32.totalorder %s21, 0
      %p90 = por %p88, %p89
      %s91 = ssub.s32 %s22, %s34
      %s92 = ssub.s32 %s23, %s30
      %s93 = sor.u32 %s91, %s92
      %p94 = scmp.eq.s32.totalorder %s93, 0
      %s96 = sadd.s32 %s95, 1
      %s97 = scalar_select %p94, %s95, %s96
      %p100 = pneg %p94
      %p101 = scmp.eq.s32.totalorder %s15, 1
      %p102 = por %p100, %p101
      %p103 = scmp.ne.s32.totalorder %s95, %s98
      %p104 = scmp.eq.s32.totalorder %s15, 0
      %p105 = por %p103, %p104
      %p106 = scmp.ne.s32.totalorder %s95, %s98
      %p107 = scmp.eq.s32.totalorder %s20, 1
      %p108 = por %p106, %p107
      %p109 = scmp.ne.s32.totalorder %s98, %s99
      %p110 = scmp.eq.s32.totalorder %s20, 0
      %p111 = por %p109, %p110
      %p112 = scmp.ne.s32.totalorder %s98, %s99
      %p113 = scmp.eq.s32.totalorder %s21, 1
      %p114 = por %p112, %p113
      %p116 = scmp.ne.s32.totalorder %s99, %s115
      %p117 = scmp.eq.s32.totalorder %s21, 0
      %p118 = por %p116, %p117
      %s119 = ssub.s32 %s22, %s34
      %s120 = ssub.s32 %s23, %s30
      %s121 = sor.u32 %s119, %s120
      %p122 = scmp.eq.s32.totalorder %s121, 0
      %s124 = sadd.s32 %s123, 1
      %s125 = scalar_select %p122, %s123, %s124
      %p128 = pneg %p122
      %p129 = scmp.eq.s32.totalorder %s15, 1
      %p130 = por %p128, %p129
      %p131 = scmp.ne.s32.totalorder %s123, %s126
      %p132 = scmp.eq.s32.totalorder %s15, 0
      %p133 = por %p131, %p132
      %p134 = scmp.ne.s32.totalorder %s123, %s126
      %p135 = scmp.eq.s32.totalorder %s20, 1
      %p136 = por %p134, %p135
      %p137 = scmp.ne.s32.totalorder %s126, %s127
      %p138 = scmp.eq.s32.totalorder %s20, 0
      %p139 = por %p137, %p138
      %p140 = scmp.ne.s32.totalorder %s126, %s127
      %p141 = scmp.eq.s32.totalorder %s21, 1
      %p142 = por %p140, %p141
      %p144 = scmp.ne.s32.totalorder %s127, %s143
      %p145 = scmp.eq.s32.totalorder %s21, 0
      %p146 = por %p144, %p145
      %p147 = scmp.le.s32.totalorder 1, %s15
      %p148 = scmp.lt.s32.totalorder %s15, 3
      %p149 = pnand %p147, %p148
      %p150 = pneg %p149
      // Predicated region
      $region9: #{tpu_custom_call.1} parent=5 // pred_check
        _
      $region10: #{tpu_custom_call.1} parent=5 // pred_check_branch
        %152 = sbr.rel (%p149) target = $region12
      $region11: #{tpu_custom_call.1} parent=5 // pred_region
        %s153 = ssub.s32 %s15, 1
      $region12: #{tpu_custom_call.1} parent=5 // pred_fallthru
        _
      %p154 = scmp.lt.s32.totalorder %s15, 2
      // Predicated region
      $region13: #{tpu_custom_call.1} parent=5 // pred_check
        %p155 = pneg %p154
      $region14: #{tpu_custom_call.1} parent=5 // pred_check_branch
        %157 = sbr.rel (%p155) target = $region16
      $region15: #{tpu_custom_call.1} parent=5 // pred_region
        // Predicated region
        $region17: #{tpu_custom_call.1} parent=15 // pred_check
          %p158 = pneg %p49
        $region18: #{tpu_custom_call.1} parent=15 // pred_check_branch
          %160 = sbr.rel (%p158) target = $region20
        $region19: #{tpu_custom_call.1} parent=15 // pred_region
          %s161 = sand.u32 %s39, 1
          %s162 = scalar_lea.sflag [#allocation3], %s161
          %s163 = sand.u32 %s39, 1
          %s164 = smul.addr %s163, 16
          %s165 = scalar_lea.vmem [#allocation2], %s164
          %s166 = smul.u32 2, %s23
          %s168 = ssub.s32 256, 256
          %169 = vsyncadd %s162, %s168
          %s170 = smul.addr %s22, 2
          %s171 = sadd.s32 %s166, %s170
          %s172 = smul.addr %s171, 128
          %s173 = scalar_lea.hbm %s0, %s172
          %s175 = sshll.u32 %s165, 4
          %s176 = int_to_ptr.vmem [resolvable:$true] %s175
          %178 = dma.hbm_to_vmem [thread:$0]  %s173, 256, %s176, %s162
        $region20: #{tpu_custom_call.1} parent=15 // pred_fallthru
          _
        // Predicated region
        $region21: #{tpu_custom_call.1} parent=15 // pred_check
          %p179 = pneg %p77
        $region22: #{tpu_custom_call.1} parent=15 // pred_check_branch
          %181 = sbr.rel (%p179) target = $region24
        $region23: #{tpu_custom_call.1} parent=15 // pred_region
          %s182 = sand.u32 %s15, 1
          %s183 = scalar_lea.sflag [#allocation5], %s182
          %s184 = sand.u32 %s67, 1
          %s185 = smul.addr %s184, 16
          %s186 = scalar_lea.vmem [#allocation4], %s185
          %s187 = smul.u32 2, %s23
          %s189 = ssub.s32 256, 256
          %190 = vsyncadd %s183, %s189
          %s191 = smul.addr %s22, 2
          %s192 = sadd.s32 %s187, %s191
          %s193 = smul.addr %s192, 128
          %s194 = scalar_lea.hbm %s1, %s193
          %s196 = sshll.u32 %s186, 4
          %s197 = int_to_ptr.vmem [resolvable:$true] %s196
          %199 = dma.hbm_to_vmem [thread:$0]  %s194, 256, %s197, %s183
        $region24: #{tpu_custom_call.1} parent=15 // pred_fallthru
          _
        // Predicated region
        $region25: #{tpu_custom_call.1} parent=15 // pred_check
          %p200 = pneg %p105
        $region26: #{tpu_custom_call.1} parent=15 // pred_check_branch
          %202 = sbr.rel (%p200) target = $region28
        $region27: #{tpu_custom_call.1} parent=15 // pred_region
          %s203 = sand.u32 %s15, 1
          %s204 = scalar_lea.sflag [#allocation5], %s203
          %s205 = sand.u32 %s95, 1
          %s206 = smul.addr %s205, 16
          %s207 = scalar_lea.vmem [#allocation6], %s206
          %s208 = smul.u32 2, %s23
          %s210 = ssub.s32 256, 256
          %211 = vsyncadd %s204, %s210
          %s212 = smul.addr %s22, 2
          %s213 = sadd.s32 %s208, %s212
          %s214 = smul.addr %s213, 128
          %s215 = scalar_lea.hbm %s2, %s214
          %s217 = sshll.u32 %s207, 4
          %s218 = int_to_ptr.vmem [resolvable:$true] %s217
          %220 = dma.hbm_to_vmem [thread:$0]  %s215, 256, %s218, %s204
        $region28: #{tpu_custom_call.1} parent=15 // pred_fallthru
          _
      $region16: #{tpu_custom_call.1} parent=5 // pred_fallthru
        _
      %p221 = scmp.le.s32.totalorder 1, %s15
      %p222 = scmp.lt.s32.totalorder %s15, 3
      %p223 = pnand %p221, %p222
      %p224 = pneg %p223
      // Predicated region
      $region29: #{tpu_custom_call.1} parent=5 // pred_check
        _
      $region30: #{tpu_custom_call.1} parent=5 // pred_check_branch
        %226 = sbr.rel (%p223) target = $region32
      $region31: #{tpu_custom_call.1} parent=5 // pred_region
        %s227 = ssub.s32 %s15, 1
        %s228 = sand.u32 %s42, 1
        %s229 = scalar_lea.sflag [#allocation3], %s228
        %s230 = sand.u32 %s42, 1
        %s231 = smul.addr %s230, 16
        %s232 = scalar_lea.vmem [#allocation2], %s231
        // Predicated region
        $region33: #{tpu_custom_call.1} parent=31 // pred_check
          %p233 = pneg %p55
        $region34: #{tpu_custom_call.1} parent=31 // pred_check_branch
          %235 = sbr.rel (%p233) target = $region36
        $region35: #{tpu_custom_call.1} parent=31 // pred_region
          %236 = dma.done %s229, 256
        $region36: #{tpu_custom_call.1} parent=31 // pred_fallthru
          _
        %s237 = sand.u32 %s20, 1
        %s238 = scalar_lea.sflag [#allocation5], %s237
        %s239 = sand.u32 %s70, 1
        %s240 = smul.addr %s239, 16
        %s241 = scalar_lea.vmem [#allocation4], %s240
        // Predicated region
        $region37: #{tpu_custom_call.1} parent=31 // pred_check
          %p242 = pneg %p83
        $region38: #{tpu_custom_call.1} parent=31 // pred_check_branch
          %244 = sbr.rel (%p242) target = $region40
        $region39: #{tpu_custom_call.1} parent=31 // pred_region
          %245 = dma.done %s238, 256
        $region40: #{tpu_custom_call.1} parent=31 // pred_fallthru
          _
        %s246 = sand.u32 %s20, 1
        %s247 = scalar_lea.sflag [#allocation5], %s246
        %s248 = sand.u32 %s98, 1
        %s249 = smul.addr %s248, 16
        %s250 = scalar_lea.vmem [#allocation6], %s249
        // Predicated region
        $region41: #{tpu_custom_call.1} parent=31 // pred_check
          %p251 = pneg %p111
        $region42: #{tpu_custom_call.1} parent=31 // pred_check_branch
          %253 = sbr.rel (%p251) target = $region44
        $region43: #{tpu_custom_call.1} parent=31 // pred_region
          %254 = dma.done %s247, 256
        $region44: #{tpu_custom_call.1} parent=31 // pred_fallthru
          _
        %s255 = sand.u32 %s42, 1
        %s256 = scalar_lea.sflag [#allocation3], %s255
        %s257 = sand.u32 %s42, 1
        %s258 = smul.addr %s257, 16
        %s259 = scalar_lea.vmem [#allocation2], %s258
        %p260 = pneg %p55
        %p261 = pneg %p52
        %s262 = sand.u32 %s20, 1
        %s263 = scalar_lea.sflag [#allocation5], %s262
        %s264 = sand.u32 %s70, 1
        %s265 = smul.addr %s264, 16
        %s266 = scalar_lea.vmem [#allocation4], %s265
        %p267 = pneg %p83
        %p268 = pneg %p80
        %s269 = sand.u32 %s20, 1
        %s270 = scalar_lea.sflag [#allocation5], %s269
        %s271 = sand.u32 %s98, 1
        %s272 = smul.addr %s271, 16
        %s273 = scalar_lea.vmem [#allocation6], %s272
        %p274 = pneg %p111
        %p275 = pneg %p108
        %p276 = pneg %p139
        %p277 = pneg %p136
        %p278 = scmp.lt.s32.totalorder %s24, 1
        %s279 = scalar_select %p278, %s24, 1
        %p280 = scmp.lt.s32.totalorder %s25, 0
        %s281 = scalar_select %p280, %s25, 0
        %s282 = sadd.s32 %s281, %s279
        %s283 = smul.addr %s282, 4
        %s284 = scalar_lea.vmem %s3, %s283
        %s285 = smul.u32 2, %s25
        %s286 = smul.u32 2, %s25
        %s287 = smul.u32 2, %s25
        %p288 = scmp.lt.s32.totalorder %s24, 1
        %s289 = scalar_select %p288, %s24, 1
        %p290 = scmp.lt.s32.totalorder %s25, 0
        %s291 = scalar_select %p290, %s25, 0
        %s292 = sadd.s32 %s291, %s289
        %s293 = smul.addr %s292, 4
        %s294 = scalar_lea.vmem %s3, %s293
        %v295 = vld [vmem:[%s232] sm:$0xff]
        %v296 = vld [vmem:[%s232 + $0x8] sm:$0xff]
        %v297 = vadd.f32 %v295, %v296
        %298 = vadd.xlane.f32.xlu0 %v297
        %v299 = vpop.xlane.xlu0 %298
        %v301 = vlaneseq
        %v302 = vand.u32 %v301, 127
        %v303 = vlaneseq
        %v304 = vshrl.u32 %v303, 7
        %v305 = vsub.s32 %v302, %v304
        %v306 = vrot.slane %v299, %v305
        %vm308 = vcmask 57344
        %309 = vst.msk [vmem:[%s294] sm:$0x1] %vm308, %v306
        %v310 = vld [vmem:[%s241] sm:$0xff]
        %v311 = vld [vmem:[%s241 + $0x8] sm:$0xff]
        %v312 = vadd.f32 %v310, %v311
        %313 = vadd.xlane.f32.xlu0 %v312
        %v314 = vpop.xlane.xlu0 %313
        %v316 = vlaneseq
        %v317 = vshrl.u32 %v316, 7
        %v318 = vsub.s32 %v302, %v317
        %v319 = vrot.slane %v314, %v318
        %321 = vst.msk [vmem:[%s294 + $0x1] sm:$0x1] %vm308, %v319
        %v322 = vld [vmem:[%s250] sm:$0xff]
        %v323 = vld [vmem:[%s250 + $0x8] sm:$0xff]
        %v324 = vadd.f32 %v322, %v323
        %325 = vadd.xlane.f32.xlu0 %v324
        %v326 = vpop.xlane.xlu0 %325
        %v328 = vlaneseq
        %v329 = vshrl.u32 %v328, 7
        %v330 = vsub.s32 %v302, %v329
        %v331 = vrot.slane %v326, %v330
        %333 = vst.msk [vmem:[%s294 + $0x2] sm:$0x1] %vm308, %v331
        %p334 = scmp.lt.s32.totalorder %s24, 1
        %s335 = scalar_select %p334, %s24, 1
        %p336 = scmp.lt.s32.totalorder %s25, 0
        %s337 = scalar_select %p336, %s25, 0
        %s338 = sadd.s32 %s337, %s335
        %s339 = smul.addr %s338, 4
        %s340 = scalar_lea.vmem %s3, %s339
        // Predicated region
        $region45: #{tpu_custom_call.1} parent=31 // pred_check
          %p341 = pneg %p136
        $region46: #{tpu_custom_call.1} parent=31 // pred_check_branch
          %343 = sbr.rel (%p341) target = $region48
        $region47: #{tpu_custom_call.1} parent=31 // pred_region
          _
        $region48: #{tpu_custom_call.1} parent=31 // pred_fallthru
          _
      $region32: #{tpu_custom_call.1} parent=5 // pred_fallthru
        _
      %p344 = scmp.le.s32.totalorder 2, %s15
      // Predicated region
      $region49: #{tpu_custom_call.1} parent=5 // pred_check
        %p345 = pneg %p344
      $region50: #{tpu_custom_call.1} parent=5 // pred_check_branch
        %347 = sbr.rel (%p345) target = $region52
      $region51: #{tpu_custom_call.1} parent=5 // pred_region
        %s348 = ssub.s32 %s15, 2
        // Predicated region
        $region53: #{tpu_custom_call.1} parent=51 // pred_check
          %p349 = pneg %p142
        $region54: #{tpu_custom_call.1} parent=51 // pred_check_branch
          %351 = sbr.rel (%p349) target = $region56
        $region55: #{tpu_custom_call.1} parent=51 // pred_region
          %p352 = scmp.lt.s32.totalorder %s26, 1
          %s353 = scalar_select %p352, %s26, 1
          %p354 = scmp.lt.s32.totalorder %s27, 0
          %s355 = scalar_select %p354, %s27, 0
          %s356 = sadd.s32 %s355, %s353
          %s357 = smul.addr %s356, 4
          %s358 = scalar_lea.vmem %s3, %s357
        $region56: #{tpu_custom_call.1} parent=51 // pred_fallthru
          _
      $region52: #{tpu_custom_call.1} parent=5 // pred_fallthru
        _
    $region6: #{tpu_custom_call.1} parent=1 // loop_footer
      %s19 = sadd.s32 1, %s15
    $region7: #{tpu_custom_call.1} parent=1 // loop_footer_branch
      %14 = sbr.rel target = $region3
    $region8: #{tpu_custom_call.1} parent=1 // loop_exit
      _
    %359 = vsyncpa [#allocation3], 1
    %s360 = scalar_lea.sflag [#allocation3], 1
    %361 = vsyncpa %s360, 1
    %362 = vsyncpa [#allocation5], 1
    %s363 = scalar_lea.sflag [#allocation5], 1
    %364 = vsyncpa %s363, 1

</llo_original>
